<compile_context>
chip_gen: v6e
topology: v6e:2x2x1
jax: 0.10.0
libtpu: 0.0.40
codegen_flags: <defaults>
</compile_context>

<pallas_src>
import functools

import jax
import jax.numpy as jnp
from jax import lax
from jax.experimental import pallas as pl
from jax.experimental.pallas import tpu as pltpu

LN_EPS = 1e-5      # PyTorch nn.LayerNorm default
NEG_BIG = -1e30    # finite "-inf" to avoid inf-inf NaNs in masked reductions


def _round_up(x, m):
    return ((x + m - 1) // m) * m


# ----------------------------------------------------------------------------
# Fused dual ProjectionHead kernel (audio + text in one pass over row tiles):
#   projected = x @ W1 + b1 ; h = relu(projected) ; y = h @ W2 + b2
#   y = y + projected ; out = LayerNorm(y) * gamma + beta
# Weights (out,in) are stored pre-transposed as (in,out) so x @ W runs on MXU.
# ----------------------------------------------------------------------------
def _projection_head_math(x, w1, w2, b1, b2, gamma, beta, matmul_dtype):
    xm = x.astype(matmul_dtype)
    projected = jnp.dot(xm, w1, preferred_element_type=jnp.float32) + b1
    h = jnp.maximum(projected, 0.0).astype(matmul_dtype)
    y = jnp.dot(h, w2, preferred_element_type=jnp.float32) + b2
    # dropout: identity (eval mode)
    y = y + projected
    mean = jnp.mean(y, axis=-1, keepdims=True)
    var = jnp.mean(jnp.square(y - mean), axis=-1, keepdims=True)
    y_norm = (y - mean) * lax.rsqrt(var + LN_EPS)
    return y_norm * gamma + beta


def dual_projection_kernel(af_ref, tf_ref, aw1, aw2, tw1, tw2, vec_ref,
                           a_out, t_out, *, matmul_dtype):
    v = vec_ref[...]  # (8, P): [ab1, ab2, ag, abeta, tb1, tb2, tg, tbeta]
    a_out[...] = _projection_head_math(af_ref[...], aw1[...], aw2[...],
                                       v[0:1], v[1:2], v[2:3], v[3:4],
                                       matmul_dtype)
    t_out[...] = _projection_head_math(tf_ref[...], tw1[...], tw2[...],
                                       v[4:5], v[5:6], v[6:7], v[7:8],
                                       matmul_dtype)


def dual_projection_heads(audio_x, text_x, audio_params, text_params,
                          *, block_rows=128, matmul_dtype=jnp.bfloat16):
    """audio_x: (..., Ea), text_x: (..., Et) -> two (N, P) embedding arrays."""
    audio_x = audio_x.reshape(-1, audio_x.shape[-1])
    text_x = text_x.reshape(-1, text_x.shape[-1])
    n = audio_x.shape[0]
    assert text_x.shape[0] == n, "audio/text batch sizes must match"
    ea, et = audio_x.shape[1], text_x.shape[1]
    p = audio_params[0].shape[1]

    aw1, ab1, aw2, ab2, ag, abt = audio_params
    tw1, tb1, tw2, tb2, tg, tbt = text_params

    aw1 = aw1.astype(matmul_dtype)
    aw2 = aw2.astype(matmul_dtype)
    tw1 = tw1.astype(matmul_dtype)
    tw2 = tw2.astype(matmul_dtype)
    # Pack the eight (1, P) vectors into a single sublane-aligned (8, P) slab.
    vec = jnp.concatenate(
        [v.astype(jnp.float32).reshape(1, p)
         for v in (ab1, ab2, ag, abt, tb1, tb2, tg, tbt)], axis=0)

    ax = audio_x.astype(matmul_dtype)
    tx = text_x.astype(matmul_dtype)

    # Row tile: big enough to feed the MXU, clamped for tiny batches.
    # (16 keeps the sublane constraint satisfied for bf16 and f32 tiles.)
    tq = min(block_rows, _round_up(n, 16))
    grid = (pl.cdiv(n, tq),)

    def full2d(shape):
        return pl.BlockSpec(shape, lambda i: (0, 0))

    kernel = functools.partial(dual_projection_kernel,
                               matmul_dtype=matmul_dtype)
    return pl.pallas_call(
        kernel,
        out_shape=(jax.ShapeDtypeStruct((n, p), jnp.float32),
                   jax.ShapeDtypeStruct((n, p), jnp.float32)),
        grid_spec=pltpu.PrefetchScalarGridSpec(
            num_scalar_prefetch=0,
            grid=grid,
            in_specs=[
                pl.BlockSpec((tq, ea), lambda i: (i, 0)),   # audio feature rows
                pl.BlockSpec((tq, et), lambda i: (i, 0)),   # text feature rows
                full2d((ea, p)),                            # audio W1
                full2d((p, p)),                             # audio W2
                full2d((et, p)),                            # text  W1
                full2d((p, p)),                             # text  W2
                full2d((8, p)),                             # packed b/gamma/beta
            ],
            out_specs=(pl.BlockSpec((tq, p), lambda i: (i, 0)),
                       pl.BlockSpec((tq, p), lambda i: (i, 0))),
        ),
        compiler_params=pltpu.CompilerParams(
            dimension_semantics=("parallel",)),
    )(ax, tx, aw1, aw2, tw1, tw2, vec)


# ----------------------------------------------------------------------------
# InfoNCE (symmetric CLIP loss with soft targets), row-tiled & transpose-free.
#   logits  = (t @ a.T) / temp
#   targets = softmax((a@a.T + t@t.T) / 2 * temp, axis=-1)
#   loss    = mean( (CE_rows(logits, targets) + CE_cols(logits, targets)) / 2 )
# Implemented as: (sum_i lse_row_i + sum_j ct_j*lse_col_j - 2*S) / (2N)
# accumulated over row tiles (online column logsumexp; no .T anywhere).
# ----------------------------------------------------------------------------
def infonce_kernel(t_tile_ref, a_tile_ref, t_all_ref, a_all_ref,
                   loss_ref,
                   ct_ref, cmax_ref, csum_ref, s_ref, lse_ref,
                   *, n_rows, tile_rows, temperature):
    i = pl.program_id(0)

    @pl.when(i == 0)
    def _init():
        ct_ref[...] = jnp.zeros_like(ct_ref)
        cmax_ref[...] = jnp.full_like(cmax_ref, NEG_BIG)
        csum_ref[...] = jnp.zeros_like(csum_ref)
        s_ref[...] = jnp.zeros_like(s_ref)
        lse_ref[...] = jnp.zeros_like(lse_ref)

    inv_temp = 1.0 / temperature

    # Validity mask for the (possibly padded) last row tile.
    row_ids = i * tile_rows + lax.broadcasted_iota(jnp.int32, (tile_rows, 1), 0)
    row_valid = row_ids < n_rows

    t_tile = jnp.where(row_valid, t_tile_ref[...], 0.0)
    a_tile = jnp.where(row_valid, a_tile_ref[...], 0.0)
    t_all = t_all_ref[...]
    a_all = a_all_ref[...]

    # Contract feature dims directly (A @ B.T on the MXU, no transpose copy).
    contract = (((1,), (1,)), ((), ()))
    logits = lax.dot_general(t_tile, a_all, contract,
                             preferred_element_type=jnp.float32) * inv_temp
    a_sim = lax.dot_general(a_tile, a_all, contract,
                            preferred_element_type=jnp.float32)
    t_sim = lax.dot_general(t_tile, t_all, contract,
                            preferred_element_type=jnp.float32)

    m = (a_sim + t_sim) * (0.5 * temperature)

    # Row-wise soft targets (softmax along lanes).
    m_max = jnp.max(m, axis=-1, keepdims=True)
    m_exp = jnp.exp(m - m_max)
    m_den = jnp.sum(m_exp, axis=-1, keepdims=True)
    targets = jnp.where(row_valid,
                        m_exp * pl.reciprocal(m_den, approx=True), 0.0)

    # Row-wise logsumexp of logits (text-side CE).
    l_max = jnp.max(logits, axis=-1, keepdims=True)
    l_sum = jnp.sum(jnp.exp(logits - l_max), axis=-1, keepdims=True)
    lse_row = jnp.where(row_valid, l_max + jnp.log(l_sum), 0.0)

    # Scalar accumulators: S = sum targets*logits, and sum of row lse.
    s_ref[...] += jnp.sum(targets * logits, keepdims=True)
    lse_ref[...] += jnp.sum(lse_row, keepdims=True)

    # Per-column target mass ct_j (axis-0 reduction, no transpose).
    ct_ref[...] += jnp.sum(targets, axis=0, keepdims=True)

    # Online column logsumexp of logits across row tiles.
    logits_cm = jnp.where(row_valid, logits, NEG_BIG)
    tile_cmax = jnp.max(logits_cm, axis=0, keepdims=True)
    new_max = jnp.maximum(cmax_ref[...], tile_cmax)
    csum_ref[...] = (csum_ref[...] * jnp.exp(cmax_ref[...] - new_max)
                     + jnp.sum(jnp.exp(logits_cm - new_max),
                               axis=0, keepdims=True))
    cmax_ref[...] = new_max

    @pl.when(i == pl.num_programs(0) - 1)
    def _finalize():
        lse_col = cmax_ref[...] + jnp.log(csum_ref[...])             # (1, N)
        audio_cross = jnp.sum(ct_ref[...] * lse_col, keepdims=True)  # (1, 1)
        loss = (lse_ref[...] + audio_cross - 2.0 * s_ref[...]) \
            * (1.0 / (2.0 * n_rows))
        loss_ref[...] = loss


def info_nce_loss(text_emb, audio_emb, *, temperature=1.0, block_rows=128):
    t = text_emb.astype(jnp.float32)
    a = audio_emb.astype(jnp.float32)
    n, p = t.shape

    tq = min(block_rows, _round_up(n, 8))
    grid = (pl.cdiv(n, tq),)

    kernel = functools.partial(infonce_kernel, n_rows=n, tile_rows=tq,
                               temperature=float(temperature))
    out = pl.pallas_call(
        kernel,
        out_shape=jax.ShapeDtypeStruct((1, 1), jnp.float32),
        grid_spec=pltpu.PrefetchScalarGridSpec(
            num_scalar_prefetch=0,
            grid=grid,
            in_specs=[
                pl.BlockSpec((tq, p), lambda i: (i, 0)),  # t row tile
                pl.BlockSpec((tq, p), lambda i: (i, 0)),  # a row tile
                pl.BlockSpec((n, p), lambda i: (0, 0)),   # t fully resident
                pl.BlockSpec((n, p), lambda i: (0, 0)),   # a fully resident
            ],
            out_specs=pl.BlockSpec((1, 1), lambda i: (0, 0)),
            scratch_shapes=[
                pltpu.VMEM((1, n), jnp.float32),   # ct_j accumulator
                pltpu.VMEM((1, n), jnp.float32),   # online column max
                pltpu.VMEM((1, n), jnp.float32),   # online column sumexp
                pltpu.VMEM((1, 1), jnp.float32),   # S accumulator
                pltpu.VMEM((1, 1), jnp.float32),   # sum row-lse accumulator
            ]),
        compiler_params=pltpu.CompilerParams(
            dimension_semantics=("arbitrary",)),   # online reduction axis
    )(t, a, t, a)
    return out[0, 0]


# ----------------------------------------------------------------------------
# PANNClip forward (minus external encoders): projection heads + loss.
# ----------------------------------------------------------------------------
def pann_clip_forward(audio_features, text_features,
                      audio_params, text_params, *, temperature=1.0,
                      block_rows=128, matmul_dtype=jnp.bfloat16):
    audio_embeddings, text_embeddings = dual_projection_heads(
        audio_features, text_features, audio_params, text_params,
        block_rows=block_rows, matmul_dtype=matmul_dtype)
    batch_loss = info_nce_loss(text_embeddings, audio_embeddings,
                               temperature=temperature,
                               block_rows=block_rows)
    return batch_loss, audio_embeddings, text_embeddings


def init_projection_head(key, embedding_dim, projection_dim=128):
    """Deterministic init mimicking nn.Linear / nn.LayerNorm shapes."""
    k1, k2, k3, k4 = jax.random.split(key, 4)
    bound1 = 1.0 / (embedding_dim ** 0.5)
    bound2 = 1.0 / (projection_dim ** 0.5)
    w1 = jax.random.uniform(k1, (embedding_dim, projection_dim),
                            jnp.float32, -bound1, bound1)
    b1 = jax.random.uniform(k2, (1, projection_dim),
                            jnp.float32, -bound1, bound1)
    w2 = jax.random.uniform(k3, (projection_dim, projection_dim),
                            jnp.float32, -bound2, bound2)
    b2 = jax.random.uniform(k4, (1, projection_dim),
                            jnp.float32, -bound2, bound2)
    gamma = jnp.ones((1, projection_dim), jnp.float32)
    beta = jnp.zeros((1, projection_dim), jnp.float32)
    return w1, b1, w2, b2, gamma, beta


# ----------------------------------------------------------------------------
# Pure-JAX reference (f32) for correctness validation.
# ----------------------------------------------------------------------------
def _ref_projection_head(x, params):
    w1, b1, w2, b2, g, bt = [p.astype(jnp.float32) for p in params]
    x = x.reshape(-1, x.shape[-1]).astype(jnp.float32)
    projected = x @ w1 + b1
    h = jnp.maximum(projected, 0.0)
    y = h @ w2 + b2 + projected
    mean = y.mean(-1, keepdims=True)
    var = ((y - mean) ** 2).mean(-1, keepdims=True)
    return (y - mean) / jnp.sqrt(var + LN_EPS) * g + bt


def _ref_forward(af, tf, ap, tp, temperature):
    a = _ref_projection_head(af, ap)
    t = _ref_projection_head(tf, tp)
    logits = (t @ a.T) / temperature
    targets = jax.nn.softmax((a @ a.T + t @ t.T) / 2.0 * temperature, axis=-1)
    texts_loss = -(targets * jax.nn.log_softmax(logits, axis=-1)).sum(-1)
    audio_loss = -(targets.T * jax.nn.log_softmax(logits.T, axis=-1)).sum(-1)
    return ((texts_loss + audio_loss) / 2.0).mean(), a, t


if __name__ == "__main__":
    key = jax.random.PRNGKey(0)
    k_af, k_tf, k_ap, k_tp = jax.random.split(key, 4)

    B = 8                 # batch
    IMG_EMB = 512         # small stand-in for image_embedding_size=2048
    TXT_EMB = 256         # small stand-in for text_embedding_size=768
    PROJ = 128            # projection_dim (module default)
    TEMP = 1.0

    # Encoder outputs (Cnn14 / RoBERTa) are taken as inputs (see TODOs above).
    audio_features = jax.random.normal(k_af, (B, IMG_EMB), jnp.float32)
    text_features = jax.random.normal(k_tf, (B, TXT_EMB), jnp.float32)

    audio_params = init_projection_head(k_ap, IMG_EMB, PROJ)
    text_params = init_projection_head(k_tp, TXT_EMB, PROJ)

    # f32-operand path: validate against pure-JAX reference.
    loss32, a32, t32 = pann_clip_forward(
        audio_features, text_features, audio_params, text_params,
        temperature=TEMP, matmul_dtype=jnp.float32)
    loss_ref, a_ref, t_ref = _ref_forward(
        audio_features, text_features, audio_params, text_params, TEMP)
    jax.block_until_ready((loss32, a32, t32, loss_ref))

    assert a32.shape == (B, PROJ) and t32.shape == (B, PROJ)
    assert loss32.shape == ()
    assert jnp.allclose(a32, a_ref, atol=2e-2, rtol=2e-2)
    assert jnp.allclose(t32, t_ref, atol=2e-2, rtol=2e-2)
    assert abs(float(loss32) - float(loss_ref)) < 2e-2

    # Default fast path: bf16 MXU operands, f32 accumulation.
    loss, audio_emb, text_emb = pann_clip_forward(
        audio_features, text_features, audio_params, text_params,
        temperature=TEMP)
    jax.block_until_ready((loss, audio_emb, text_emb))

    assert audio_emb.shape == (B, PROJ) and text_emb.shape == (B, PROJ)
    assert loss.shape == ()
    assert bool(jnp.isfinite(loss))
    assert bool(jnp.all(jnp.isfinite(audio_emb)))
    assert bool(jnp.all(jnp.isfinite(text_emb)))

    print("KERNEL_OK")
</pallas_src>

<mosaic_0001>
module attributes {stable_mosaic.version = 11 : i64} {
  func.func @dual_projection_kernel(%arg0: i32, %arg1: memref<16x512xf32, #tpu.memory_space<vmem>>, %arg2: memref<16x256xf32, #tpu.memory_space<vmem>>, %arg3: memref<512x128xf32, #tpu.memory_space<vmem>>, %arg4: memref<128x128xf32, #tpu.memory_space<vmem>>, %arg5: memref<256x128xf32, #tpu.memory_space<vmem>>, %arg6: memref<128x128xf32, #tpu.memory_space<vmem>>, %arg7: memref<8x128xf32, #tpu.memory_space<vmem>>, %arg8: memref<16x128xf32, #tpu.memory_space<vmem>>, %arg9: memref<16x128xf32, #tpu.memory_space<vmem>>) attributes {dimension_semantics = [#tpu.dimension_semantics<parallel>], iteration_bounds = array<i64: 1>, scalar_prefetch = 0 : i64, scratch_operands = 0 : i64, tpu.core_type = #tpu.core_type<tc>, window_params = [{transform_indices = @transform_0, window_bounds = array<i64: 16, 512>}, {transform_indices = @transform_1, window_bounds = array<i64: 16, 256>}, {pipeline_mode = #tpu.pipeline_mode<synchronous>, transform_indices = @transform_2, window_bounds = array<i64: 512, 128>}, {pipeline_mode = #tpu.pipeline_mode<synchronous>, transform_indices = @transform_3, window_bounds = array<i64: 128, 128>}, {pipeline_mode = #tpu.pipeline_mode<synchronous>, transform_indices = @transform_4, window_bounds = array<i64: 256, 128>}, {pipeline_mode = #tpu.pipeline_mode<synchronous>, transform_indices = @transform_5, window_bounds = array<i64: 128, 128>}, {pipeline_mode = #tpu.pipeline_mode<synchronous>, transform_indices = @transform_6, window_bounds = array<i64: 8, 128>}, {transform_indices = @transform_7, window_bounds = array<i64: 16, 128>}, {transform_indices = @transform_8, window_bounds = array<i64: 16, 128>}]} {
    %c0 = arith.constant 0 : index
    %c0_0 = arith.constant 0 : index
    %0 = vector.load %arg7[%c0, %c0_0] : memref<8x128xf32, #tpu.memory_space<vmem>>, vector<8x128xf32>
    %c0_1 = arith.constant 0 : index
    %c0_2 = arith.constant 0 : index
    %1 = vector.load %arg1[%c0_1, %c0_2] : memref<16x512xf32, #tpu.memory_space<vmem>>, vector<16x512xf32>
    %c0_3 = arith.constant 0 : index
    %c0_4 = arith.constant 0 : index
    %2 = vector.load %arg3[%c0_3, %c0_4] : memref<512x128xf32, #tpu.memory_space<vmem>>, vector<512x128xf32>
    %c0_5 = arith.constant 0 : index
    %c0_6 = arith.constant 0 : index
    %3 = vector.load %arg4[%c0_5, %c0_6] : memref<128x128xf32, #tpu.memory_space<vmem>>, vector<128x128xf32>
    %4 = vector.extract_strided_slice %0 {offsets = [0, 0], sizes = [1, 128], strides = [1, 1]} : vector<8x128xf32> to vector<1x128xf32>
    %5 = vector.extract_strided_slice %0 {offsets = [1, 0], sizes = [1, 128], strides = [1, 1]} : vector<8x128xf32> to vector<1x128xf32>
    %6 = vector.extract_strided_slice %0 {offsets = [2, 0], sizes = [1, 128], strides = [1, 1]} : vector<8x128xf32> to vector<1x128xf32>
    %7 = vector.extract_strided_slice %0 {offsets = [3, 0], sizes = [1, 128], strides = [1, 1]} : vector<8x128xf32> to vector<1x128xf32>
    %cst = arith.constant dense<0.000000e+00> : vector<16x128xf32>
    %8 = tpu.matmul %1, %2, %cst {dimension_numbers = #tpu.dot_dimension_numbers<[1], [0], [0], [1], [0, 0, 1, 1], [], []>} : vector<16x512xf32>, vector<512x128xf32>, vector<16x128xf32> -> vector<16x128xf32>
    %9 = vector.broadcast %4 : vector<1x128xf32> to vector<16x128xf32>
    %10 = arith.addf %8, %9 : vector<16x128xf32>
    %cst_7 = arith.constant 0.000000e+00 : f32
    %11 = vector.broadcast %cst_7 : f32 to vector<16x128xf32>
    %12 = arith.maximumf %10, %11 : vector<16x128xf32>
    %cst_8 = arith.constant dense<0.000000e+00> : vector<16x128xf32>
    %13 = tpu.matmul %12, %3, %cst_8 {dimension_numbers = #tpu.dot_dimension_numbers<[1], [0], [0], [1], [0, 0, 1, 1], [], []>} : vector<16x128xf32>, vector<128x128xf32>, vector<16x128xf32> -> vector<16x128xf32>
    %14 = vector.broadcast %5 : vector<1x128xf32> to vector<16x128xf32>
    %15 = arith.addf %13, %14 : vector<16x128xf32>
    %16 = arith.addf %15, %10 : vector<16x128xf32>
    %cst_9 = arith.constant dense<0.000000e+00> : vector<16xf32>
    %17 = vector.multi_reduction <add>, %16, %cst_9 [1] : vector<16x128xf32> to vector<16xf32>
    %18 = vector.shape_cast %17 : vector<16xf32> to vector<16x1xf32>
    %cst_10 = arith.constant 1.280000e+02 : f32
    %19 = vector.broadcast %cst_10 : f32 to vector<16x1xf32>
    %20 = arith.divf %18, %19 : vector<16x1xf32>
    %21 = vector.broadcast %20 : vector<16x1xf32> to vector<16x128xf32>
    %22 = arith.subf %16, %21 : vector<16x128xf32>
    %23 = arith.mulf %22, %22 : vector<16x128xf32>
    %cst_11 = arith.constant dense<0.000000e+00> : vector<16xf32>
    %24 = vector.multi_reduction <add>, %23, %cst_11 [1] : vector<16x128xf32> to vector<16xf32>
    %25 = vector.shape_cast %24 : vector<16xf32> to vector<16x1xf32>
    %cst_12 = arith.constant 1.280000e+02 : f32
    %26 = vector.broadcast %cst_12 : f32 to vector<16x1xf32>
    %27 = arith.divf %25, %26 : vector<16x1xf32>
    %28 = vector.broadcast %20 : vector<16x1xf32> to vector<16x128xf32>
    %29 = arith.subf %16, %28 : vector<16x128xf32>
    %cst_13 = arith.constant 9.99999974E-6 : f32
    %30 = vector.broadcast %cst_13 : f32 to vector<16x1xf32>
    %31 = arith.addf %27, %30 : vector<16x1xf32>
    %32 = math.rsqrt %31 : vector<16x1xf32>
    %33 = vector.broadcast %32 : vector<16x1xf32> to vector<16x128xf32>
    %34 = arith.mulf %29, %33 : vector<16x128xf32>
    %35 = vector.broadcast %6 : vector<1x128xf32> to vector<16x128xf32>
    %36 = arith.mulf %34, %35 : vector<16x128xf32>
    %37 = vector.broadcast %7 : vector<1x128xf32> to vector<16x128xf32>
    %38 = arith.addf %36, %37 : vector<16x128xf32>
    %c0_14 = arith.constant 0 : index
    %c0_15 = arith.constant 0 : index
    %39 = vector.load %arg8[%c0_14, %c0_15] : memref<16x128xf32, #tpu.memory_space<vmem>>, vector<16x128xf32>
    tpu.vector_store %arg8[%c0_14, %c0_15], %38 {strides = array<i32>} : memref<16x128xf32, #tpu.memory_space<vmem>>, vector<16x128xf32>,
    %c0_16 = arith.constant 0 : index
    %c0_17 = arith.constant 0 : index
    %40 = vector.load %arg2[%c0_16, %c0_17] : memref<16x256xf32, #tpu.memory_space<vmem>>, vector<16x256xf32>
    %c0_18 = arith.constant 0 : index
    %c0_19 = arith.constant 0 : index
    %41 = vector.load %arg5[%c0_18, %c0_19] : memref<256x128xf32, #tpu.memory_space<vmem>>, vector<256x128xf32>
    %c0_20 = arith.constant 0 : index
    %c0_21 = arith.constant 0 : index
    %42 = vector.load %arg6[%c0_20, %c0_21] : memref<128x128xf32, #tpu.memory_space<vmem>>, vector<128x128xf32>
    %43 = vector.extract_strided_slice %0 {offsets = [4, 0], sizes = [1, 128], strides = [1, 1]} : vector<8x128xf32> to vector<1x128xf32>
    %44 = vector.extract_strided_slice %0 {offsets = [5, 0], sizes = [1, 128], strides = [1, 1]} : vector<8x128xf32> to vector<1x128xf32>
    %45 = vector.extract_strided_slice %0 {offsets = [6, 0], sizes = [1, 128], strides = [1, 1]} : vector<8x128xf32> to vector<1x128xf32>
    %46 = vector.extract_strided_slice %0 {offsets = [7, 0], sizes = [1, 128], strides = [1, 1]} : vector<8x128xf32> to vector<1x128xf32>
    %cst_22 = arith.constant dense<0.000000e+00> : vector<16x128xf32>
    %47 = tpu.matmul %40, %41, %cst_22 {dimension_numbers = #tpu.dot_dimension_numbers<[1], [0], [0], [1], [0, 0, 1, 1], [], []>} : vector<16x256xf32>, vector<256x128xf32>, vector<16x128xf32> -> vector<16x128xf32>
    %48 = vector.broadcast %43 : vector<1x128xf32> to vector<16x128xf32>
    %49 = arith.addf %47, %48 : vector<16x128xf32>
    %cst_23 = arith.constant 0.000000e+00 : f32
    %50 = vector.broadcast %cst_23 : f32 to vector<16x128xf32>
    %51 = arith.maximumf %49, %50 : vector<16x128xf32>
    %cst_24 = arith.constant dense<0.000000e+00> : vector<16x128xf32>
    %52 = tpu.matmul %51, %42, %cst_24 {dimension_numbers = #tpu.dot_dimension_numbers<[1], [0], [0], [1], [0, 0, 1, 1], [], []>} : vector<16x128xf32>, vector<128x128xf32>, vector<16x128xf32> -> vector<16x128xf32>
    %53 = vector.broadcast %44 : vector<1x128xf32> to vector<16x128xf32>
    %54 = arith.addf %52, %53 : vector<16x128xf32>
    %55 = arith.addf %54, %49 : vector<16x128xf32>
    %cst_25 = arith.constant dense<0.000000e+00> : vector<16xf32>
    %56 = vector.multi_reduction <add>, %55, %cst_25 [1] : vector<16x128xf32> to vector<16xf32>
    %57 = vector.shape_cast %56 : vector<16xf32> to vector<16x1xf32>
    %cst_26 = arith.constant 1.280000e+02 : f32
    %58 = vector.broadcast %cst_26 : f32 to vector<16x1xf32>
    %59 = arith.divf %57, %58 : vector<16x1xf32>
    %60 = vector.broadcast %59 : vector<16x1xf32> to vector<16x128xf32>
    %61 = arith.subf %55, %60 : vector<16x128xf32>
    %62 = arith.mulf %61, %61 : vector<16x128xf32>
    %cst_27 = arith.constant dense<0.000000e+00> : vector<16xf32>
    %63 = vector.multi_reduction <add>, %62, %cst_27 [1] : vector<16x128xf32> to vector<16xf32>
    %64 = vector.shape_cast %63 : vector<16xf32> to vector<16x1xf32>
    %cst_28 = arith.constant 1.280000e+02 : f32
    %65 = vector.broadcast %cst_28 : f32 to vector<16x1xf32>
    %66 = arith.divf %64, %65 : vector<16x1xf32>
    %67 = vector.broadcast %59 : vector<16x1xf32> to vector<16x128xf32>
    %68 = arith.subf %55, %67 : vector<16x128xf32>
    %cst_29 = arith.constant 9.99999974E-6 : f32
    %69 = vector.broadcast %cst_29 : f32 to vector<16x1xf32>
    %70 = arith.addf %66, %69 : vector<16x1xf32>
    %71 = math.rsqrt %70 : vector<16x1xf32>
    %72 = vector.broadcast %71 : vector<16x1xf32> to vector<16x128xf32>
    %73 = arith.mulf %68, %72 : vector<16x128xf32>
    %74 = vector.broadcast %45 : vector<1x128xf32> to vector<16x128xf32>
    %75 = arith.mulf %73, %74 : vector<16x128xf32>
    %76 = vector.broadcast %46 : vector<1x128xf32> to vector<16x128xf32>
    %77 = arith.addf %75, %76 : vector<16x128xf32>
    %c0_30 = arith.constant 0 : index
    %c0_31 = arith.constant 0 : index
    %78 = vector.load %arg9[%c0_30, %c0_31] : memref<16x128xf32, #tpu.memory_space<vmem>>, vector<16x128xf32>
    tpu.vector_store %arg9[%c0_30, %c0_31], %77 {strides = array<i32>} : memref<16x128xf32, #tpu.memory_space<vmem>>, vector<16x128xf32>,
    return
  }
  func.func @transform_0(%arg0: i32) -> (i32, i32) {
    %c0_i32 = arith.constant 0 : i32
    %c0_i32_0 = arith.constant 0 : i32
    return %arg0, %c0_i32 : i32, i32
  }
  func.func @transform_1(%arg0: i32) -> (i32, i32) {
    %c0_i32 = arith.constant 0 : i32
    %c0_i32_0 = arith.constant 0 : i32
    return %arg0, %c0_i32 : i32, i32
  }
  func.func @transform_2(%arg0: i32) -> (i32, i32) {
    %c0_i32 = arith.constant 0 : i32
    %c0_i32_0 = arith.constant 0 : i32
    %c0_i32_1 = arith.constant 0 : i32
    return %c0_i32, %c0_i32_0 : i32, i32
  }
  func.func @transform_3(%arg0: i32) -> (i32, i32) {
    %c0_i32 = arith.constant 0 : i32
    %c0_i32_0 = arith.constant 0 : i32
    %c0_i32_1 = arith.constant 0 : i32
    return %c0_i32, %c0_i32_0 : i32, i32
  }
  func.func @transform_4(%arg0: i32) -> (i32, i32) {
    %c0_i32 = arith.constant 0 : i32
    %c0_i32_0 = arith.constant 0 : i32
    %c0_i32_1 = arith.constant 0 : i32
    return %c0_i32, %c0_i32_0 : i32, i32
  }
  func.func @transform_5(%arg0: i32) -> (i32, i32) {
    %c0_i32 = arith.constant 0 : i32
    %c0_i32_0 = arith.constant 0 : i32
    %c0_i32_1 = arith.constant 0 : i32
    return %c0_i32, %c0_i32_0 : i32, i32
  }
  func.func @transform_6(%arg0: i32) -> (i32, i32) {
    %c0_i32 = arith.constant 0 : i32
    %c0_i32_0 = arith.constant 0 : i32
    %c0_i32_1 = arith.constant 0 : i32
    return %c0_i32, %c0_i32_0 : i32, i32
  }
  func.func @transform_7(%arg0: i32) -> (i32, i32) {
    %c0_i32 = arith.constant 0 : i32
    %c0_i32_0 = arith.constant 0 : i32
    return %arg0, %c0_i32 : i32, i32
  }
  func.func @transform_8(%arg0: i32) -> (i32, i32) {
    %c0_i32 = arith.constant 0 : i32
    %c0_i32_0 = arith.constant 0 : i32
    return %arg0, %c0_i32 : i32, i32
  }
}

</mosaic_0001>

<llo_original>
// kernel: tpu_custom_call.1
$region0: #{tpu_custom_call.1}
  #allocation0 [shape = 'u32[]', space=smem, size = 0x4, offset = 0x4, fixed_abs, tag = 'smem constant byte address 0x4 - core index']
  #allocation1 [shape = 'u32[144,128]{1,0:T(1,128)}', space=vmem, size = 0x12000, scoped, tag = 'internal scratch']
  %s0 = inlined_call_operand.hbm [shape: f32[8,512], index: 0, kind: input, shape index: {}]
  %s1 = inlined_call_operand.hbm [shape: f32[8,256], index: 1, kind: input, shape index: {}]
  %s2 = inlined_call_operand.hbm [shape: f32[512,128], index: 2, kind: input, shape index: {}]
  %s3 = inlined_call_operand.hbm [shape: f32[128,128], index: 3, kind: input, shape index: {}]
  %s4 = inlined_call_operand.hbm [shape: f32[256,128], index: 4, kind: input, shape index: {}]
  %s5 = inlined_call_operand.hbm [shape: f32[128,128], index: 5, kind: input, shape index: {}]
  %s6 = inlined_call_operand.vmem [shape: f32[8,128], index: 6, kind: input, shape index: {}]
  %s7 = inlined_call_operand.hbm [shape: f32[8,128], index: 7, kind: output, shape index: {0}]
  %s8 = inlined_call_operand.hbm [shape: f32[8,128], index: 8, kind: output, shape index: {1}]
  %9 = xla_tuple %s7, %s8
  %s10 = sld [smem:[#allocation0]]
  $region70: #{tpu_custom_call.1} parent=0
    _
  %s12 = ssub.s32 1, %s10
  %s13 = scalar_select 0, %s12, %s10
  $region1: #{tpu_custom_call.1} parent=0
    #allocation2 [shape = 'u8[32768]{0}', space=vmem, size = 0x8000, scoped, tag = 'input window, operand 0, single buffered']
    #allocation3 [shape = 's32[1]{0}', space=sflag, size = 0x4, scoped, tag = 'scoped memory for tpu_custom_call.1']
    #allocation4 [shape = 's32[1]{0}', space=sflag, size = 0x4, scoped, tag = 'scoped memory for tpu_custom_call.1']
    #allocation5 [shape = 'u8[16384]{0}', space=vmem, size = 0x4000, scoped, tag = 'input window, operand 1, single buffered']
    #allocation6 [shape = 's32[1]{0}', space=sflag, size = 0x4, scoped, tag = 'scoped memory for tpu_custom_call.1']
    #allocation7 [shape = 'u8[262144]{0}', space=vmem, size = 0x40000, scoped, tag = 'input window, operand 2, single buffered']
    #allocation8 [shape = 'u8[65536]{0}', space=vmem, size = 0x10000, scoped, tag = 'input window, operand 3, single buffered']
    #allocation9 [shape = 's32[1]{0}', space=sflag, size = 0x4, scoped, tag = 'scoped memory for tpu_custom_call.1']
    #allocation10 [shape = 'u8[131072]{0}', space=vmem, size = 0x20000, scoped, tag = 'input window, operand 4, single buffered']
    #allocation11 [shape = 'u8[65536]{0}', space=vmem, size = 0x10000, scoped, tag = 'input window, operand 5, single buffered']
    #allocation12 [shape = 's32[1]{0}', space=sflag, size = 0x4, scoped, tag = 'scoped memory for tpu_custom_call.1']
    #allocation13 [shape = 'u8[8192]{0}', space=vmem, size = 0x2000, scoped, tag = 'output window, operand 0, single buffered']
    #allocation14 [shape = 'u8[8192]{0}', space=vmem, size = 0x2000, scoped, tag = 'output window, operand 1, single buffered']
    #allocation15 [shape = 's32[1]{0}', space=sflag, size = 0x4, scoped, tag = 'scoped memory for tpu_custom_call.1']
    %14 = vsyncpa [#allocation3], 0
    %15 = vsyncpa [#allocation6], 0
    %16 = vsyncpa [#allocation9], 0
    %17 = vsyncpa [#allocation12], 0
    %18 = vsyncpa [#allocation4], 0
    %19 = vsyncpa [#allocation15], 0
    // Predicated region
    $region2: #{tpu_custom_call.1} parent=1 // pred_check
      _
    $region3: #{tpu_custom_call.1} parent=1 // pred_check_branch
      %21 = sbr.rel (0) target = $region5
    $region4: #{tpu_custom_call.1} parent=1 // pred_region
      %s23 = ssub.s32 1024, 512
      %24 = vsyncadd [#allocation3], %s23
      %s25 = sshll.u32 [#allocation2], 4
      %s26 = int_to_ptr.vmem [resolvable:$true] %s25
      %31 = dma.hbm_to_vmem [thread:$0]  %s0, 512, %s26, [#allocation3], 512, 512, 32
    $region5: #{tpu_custom_call.1} parent=1 // pred_fallthru
      _
    // Predicated region
    $region6: #{tpu_custom_call.1} parent=1 // pred_check
      _
    $region7: #{tpu_custom_call.1} parent=1 // pred_check_branch
      %33 = sbr.rel (0) target = $region9
    $region8: #{tpu_custom_call.1} parent=1 // pred_region
      %s35 = ssub.s32 512, 256
      %36 = vsyncadd [#allocation6], %s35
      %s37 = sshll.u32 [#allocation5], 4
      %s38 = int_to_ptr.vmem [resolvable:$true] %s37
      %43 = dma.hbm_to_vmem [thread:$0]  %s1, 256, %s38, [#allocation6], 256, 256, 16
    $region9: #{tpu_custom_call.1} parent=1 // pred_fallthru
      _
    // Predicated region
    $region10: #{tpu_custom_call.1} parent=1 // pred_check
      _
    $region11: #{tpu_custom_call.1} parent=1 // pred_check_branch
      %45 = sbr.rel (0) target = $region13
    $region12: #{tpu_custom_call.1} parent=1 // pred_region
      %s47 = ssub.s32 8192, 8192
      %48 = vsyncadd [#allocation6], %s47
      %s49 = sshll.u32 [#allocation7], 4
      %s50 = int_to_ptr.vmem [resolvable:$true] %s49
      %55 = dma.hbm_to_vmem [thread:$0]  %s2, 8192, %s50, [#allocation6], 128, 128, 8
    $region13: #{tpu_custom_call.1} parent=1 // pred_fallthru
      _
    // Predicated region
    $region14: #{tpu_custom_call.1} parent=1 // pred_check
      _
    $region15: #{tpu_custom_call.1} parent=1 // pred_check_branch
      %57 = sbr.rel (0) target = $region17
    $region16: #{tpu_custom_call.1} parent=1 // pred_region
      %s59 = ssub.s32 2048, 2048
      %60 = vsyncadd [#allocation9], %s59
      %s61 = sshll.u32 [#allocation8], 4
      %s62 = int_to_ptr.vmem [resolvable:$true] %s61
      %67 = dma.hbm_to_vmem [thread:$0]  %s3, 2048, %s62, [#allocation9], 128, 128, 8
    $region17: #{tpu_custom_call.1} parent=1 // pred_fallthru
      _
    // Predicated region
    $region18: #{tpu_custom_call.1} parent=1 // pred_check
      _
    $region19: #{tpu_custom_call.1} parent=1 // pred_check_branch
      %69 = sbr.rel (0) target = $region21
    $region20: #{tpu_custom_call.1} parent=1 // pred_region
      %s71 = ssub.s32 4096, 4096
      %72 = vsyncadd [#allocation9], %s71
      %s73 = sshll.u32 [#allocation10], 4
      %s74 = int_to_ptr.vmem [resolvable:$true] %s73
      %79 = dma.hbm_to_vmem [thread:$0]  %s4, 4096, %s74, [#allocation9], 128, 128, 8
    $region21: #{tpu_custom_call.1} parent=1 // pred_fallthru
      _
    // Predicated region
    $region22: #{tpu_custom_call.1} parent=1 // pred_check
      _
    $region23: #{tpu_custom_call.1} parent=1 // pred_check_branch
      %81 = sbr.rel (0) target = $region25
    $region24: #{tpu_custom_call.1} parent=1 // pred_region
      %s83 = ssub.s32 2048, 2048
      %84 = vsyncadd [#allocation12], %s83
      %s85 = sshll.u32 [#allocation11], 4
      %s86 = int_to_ptr.vmem [resolvable:$true] %s85
      %91 = dma.hbm_to_vmem [thread:$0]  %s5, 2048, %s86, [#allocation12], 128, 128, 8
    $region25: #{tpu_custom_call.1} parent=1 // pred_fallthru
      _
    // Predicated region
    $region26: #{tpu_custom_call.1} parent=1 // pred_check
      _
    $region27: #{tpu_custom_call.1} parent=1 // pred_check_branch
      %93 = sbr.rel (0) target = $region29
    $region28: #{tpu_custom_call.1} parent=1 // pred_region
      _
    $region29: #{tpu_custom_call.1} parent=1 // pred_fallthru
      _
    // Predicated region
    $region30: #{tpu_custom_call.1} parent=1 // pred_check
      _
    $region31: #{tpu_custom_call.1} parent=1 // pred_check_branch
      %95 = sbr.rel (0) target = $region33
    $region32: #{tpu_custom_call.1} parent=1 // pred_region
      %96 = dma.done [#allocation3], 1024
    $region33: #{tpu_custom_call.1} parent=1 // pred_fallthru
      _
    // Predicated region
    $region34: #{tpu_custom_call.1} parent=1 // pred_check
      _
    $region35: #{tpu_custom_call.1} parent=1 // pred_check_branch
      %98 = sbr.rel (0) target = $region37
    $region36: #{tpu_custom_call.1} parent=1 // pred_region
      %99 = dma.done [#allocation6], 512
    $region37: #{tpu_custom_call.1} parent=1 // pred_fallthru
      _
    // Predicated region
    $region38: #{tpu_custom_call.1} parent=1 // pred_check
      _
    $region39: #{tpu_custom_call.1} parent=1 // pred_check_branch
      %101 = sbr.rel (0) target = $region41
    $region40: #{tpu_custom_call.1} parent=1 // pred_region
      %102 = dma.done [#allocation6], 8192
    $region41: #{tpu_custom_call.1} parent=1 // pred_fallthru
      _
    // Predicated region
    $region42: #{tpu_custom_call.1} parent=1 // pred_check
      _
    $region43: #{tpu_custom_call.1} parent=1 // pred_check_branch
      %104 = sbr.rel (0) target = $region45
    $region44: #{tpu_custom_call.1} parent=1 // pred_region
      %105 = dma.done [#allocation9], 2048
    $region45: #{tpu_custom_call.1} parent=1 // pred_fallthru
      _
    // Predicated region
    $region46: #{tpu_custom_call.1} parent=1 // pred_check
      _
    $region47: #{tpu_custom_call.1} parent=1 // pred_check_branch
      %107 = sbr.rel (0) target = $region49
    $region48: #{tpu_custom_call.1} parent=1 // pred_region
      %108 = dma.done [#allocation9], 4096
    $region49: #{tpu_custom_call.1} parent=1 // pred_fallthru
      _
    // Predicated region
    $region50: #{tpu_custom_call.1} parent=1 // pred_check
      _
    $region51: #{tpu_custom_call.1} parent=1 // pred_check_branch
      %110 = sbr.rel (0) target = $region53
    $region52: #{tpu_custom_call.1} parent=1 // pred_region
      %111 = dma.done [#allocation12], 2048
    $region53: #{tpu_custom_call.1} parent=1 // pred_fallthru
      _
    %v112 = vld [vmem:[%s6] sm:$0xff]
    %v113 = vld [vmem:[#allocation2] sm:$0xff]
    %v114 = vld [vmem:[#allocation2 + $0x8] sm:$0xff]
    %v115 = vld [vmem:[#allocation2 + $0x10] sm:$0xff]
    %v116 = vld [vmem:[#allocation2 + $0x18] sm:$0xff]
    %v117 = vld [vmem:[#allocation2 + $0x20] sm:$0xff]
    %v118 = vld [vmem:[#allocation2 + $0x28] sm:$0xff]
    %v119 = vld [vmem:[#allocation2 + $0x30] sm:$0xff]
    %v120 = vld [vmem:[#allocation2 + $0x38] sm:$0xff]
    %v121 = vld [vmem:[#allocation7] sm:$0xff]
    %v122 = vld [vmem:[#allocation7 + $0x8] sm:$0xff]
    %v123 = vld [vmem:[#allocation7 + $0x10] sm:$0xff]
    %v124 = vld [vmem:[#allocation7 + $0x18] sm:$0xff]
    %v125 = vld [vmem:[#allocation7 + $0x20] sm:$0xff]
    %v126 = vld [vmem:[#allocation7 + $0x28] sm:$0xff]
    %v127 = vld [vmem:[#allocation7 + $0x30] sm:$0xff]
    %v128 = vld [vmem:[#allocation7 + $0x38] sm:$0xff]
    %v129 = vld [vmem:[#allocation7 + $0x40] sm:$0xff]
    %v130 = vld [vmem:[#allocation7 + $0x48] sm:$0xff]
    %v131 = vld [vmem:[#allocation7 + $0x50] sm:$0xff]
    %v132 = vld [vmem:[#allocation7 + $0x58] sm:$0xff]
    %v133 = vld [vmem:[#allocation7 + $0x60] sm:$0xff]
    %v134 = vld [vmem:[#allocation7 + $0x68] sm:$0xff]
    %v135 = vld [vmem:[#allocation7 + $0x70] sm:$0xff]
    %v136 = vld [vmem:[#allocation7 + $0x78] sm:$0xff]
    %v137 = vld [vmem:[#allocation7 + $0x80] sm:$0xff]
    %v138 = vld [vmem:[#allocation7 + $0x88] sm:$0xff]
    %v139 = vld [vmem:[#allocation7 + $0x90] sm:$0xff]
    %v140 = vld [vmem:[#allocation7 + $0x98] sm:$0xff]
    %v141 = vld [vmem:[#allocation7 + $0xa0] sm:$0xff]
    %v142 = vld [vmem:[#allocation7 + $0xa8] sm:$0xff]
    %v143 = vld [vmem:[#allocation7 + $0xb0] sm:$0xff]
    %v144 = vld [vmem:[#allocation7 + $0xb8] sm:$0xff]
    %v145 = vld [vmem:[#allocation7 + $0xc0] sm:$0xff]
    %v146 = vld [vmem:[#allocation7 + $0xc8] sm:$0xff]
    %v147 = vld [vmem:[#allocation7 + $0xd0] sm:$0xff]
    %v148 = vld [vmem:[#allocation7 + $0xd8] sm:$0xff]
    %v149 = vld [vmem:[#allocation7 + $0xe0] sm:$0xff]
    %v150 = vld [vmem:[#allocation7 + $0xe8] sm:$0xff]
    %v151 = vld [vmem:[#allocation7 + $0xf0] sm:$0xff]
    %v152 = vld [vmem:[#allocation7 + $0xf8] sm:$0xff]
    %v153 = vld [vmem:[#allocation7 + $0x100] sm:$0xff]
    %v154 = vld [vmem:[#allocation7 + $0x108] sm:$0xff]
    %v155 = vld [vmem:[#allocation7 + $0x110] sm:$0xff]
    %v156 = vld [vmem:[#allocation7 + $0x118] sm:$0xff]
    %v157 = vld [vmem:[#allocation7 + $0x120] sm:$0xff]
    %v158 = vld [vmem:[#allocation7 + $0x128] sm:$0xff]
    %v159 = vld [vmem:[#allocation7 + $0x130] sm:$0xff]
    %v160 = vld [vmem:[#allocation7 + $0x138] sm:$0xff]
    %v161 = vld [vmem:[#allocation7 + $0x140] sm:$0xff]
    %v162 = vld [vmem:[#allocation7 + $0x148] sm:$0xff]
    %v163 = vld [vmem:[#allocation7 + $0x150] sm:$0xff]
    %v164 = vld [vmem:[#allocation7 + $0x158] sm:$0xff]
    %v165 = vld [vmem:[#allocation7 + $0x160] sm:$0xff]
    %v166 = vld [vmem:[#allocation7 + $0x168] sm:$0xff]
    %v167 = vld [vmem:[#allocation7 + $0x170] sm:$0xff]
    %v168 = vld [vmem:[#allocation7 + $0x178] sm:$0xff]
    %v169 = vld [vmem:[#allocation7 + $0x180] sm:$0xff]
    %v170 = vld [vmem:[#allocation7 + $0x188] sm:$0xff]
    %v171 = vld [vmem:[#allocation7 + $0x190] sm:$0xff]
    %v172 = vld [vmem:[#allocation7 + $0x198] sm:$0xff]
    %v173 = vld [vmem:[#allocation7 + $0x1a0] sm:$0xff]
    %v174 = vld [vmem:[#allocation7 + $0x1a8] sm:$0xff]
    %v175 = vld [vmem:[#allocation7 + $0x1b0] sm:$0xff]
    %v176 = vld [vmem:[#allocation7 + $0x1b8] sm:$0xff]
    %v177 = vld [vmem:[#allocation7 + $0x1c0] sm:$0xff]
    %v178 = vld [vmem:[#allocation7 + $0x1c8] sm:$0xff]
    %v179 = vld [vmem:[#allocation7 + $0x1d0] sm:$0xff]
    %v180 = vld [vmem:[#allocation7 + $0x1d8] sm:$0xff]
    %v181 = vld [vmem:[#allocation7 + $0x1e0] sm:$0xff]
    %v182 = vld [vmem:[#allocation7 + $0x1e8] sm:$0xff]
    %v183 = vld [vmem:[#allocation7 + $0x1f0] sm:$0xff]
    %v184 = vld [vmem:[#allocation7 + $0x1f8] sm:$0xff]
    %v185 = vld [vmem:[#allocation8] sm:$0xff]
    %v186 = vld [vmem:[#allocation8 + $0x8] sm:$0xff]
    %v187 = vld [vmem:[#allocation8 + $0x10] sm:$0xff]
    %v188 = vld [vmem:[#allocation8 + $0x18] sm:$0xff]
    %v189 = vld [vmem:[#allocation8 + $0x20] sm:$0xff]
    %v190 = vld [vmem:[#allocation8 + $0x28] sm:$0xff]
    %v191 = vld [vmem:[#allocation8 + $0x30] sm:$0xff]
    %v192 = vld [vmem:[#allocation8 + $0x38] sm:$0xff]
    %v193 = vld [vmem:[#allocation8 + $0x40] sm:$0xff]
    %v194 = vld [vmem:[#allocation8 + $0x48] sm:$0xff]
    %v195 = vld [vmem:[#allocation8 + $0x50] sm:$0xff]
    %v196 = vld [vmem:[#allocation8 + $0x58] sm:$0xff]
    %v197 = vld [vmem:[#allocation8 + $0x60] sm:$0xff]
    %v198 = vld [vmem:[#allocation8 + $0x68] sm:$0xff]
    %v199 = vld [vmem:[#allocation8 + $0x70] sm:$0xff]
    %v200 = vld [vmem:[#allocation8 + $0x78] sm:$0xff]
    %v201 = vlaneseq
    %v202 = vshrl.u32 %v201, 7
    %v203 = vsub.s32 0, %v202
    %v204 = vrot.slane %v112, %v203
    %205 = vmatprep.subr.mxu0 0.0
    %206 = vmatpush1.msra.mxu0 %v136
    %207 = vmatprep.subr.mxu0 0.0
    %208 = vmatpush1.msra.mxu0 %v135
    %209 = vmatprep.subr.mxu0 0.0
    %210 = vmatpush1.msra.mxu0 %v134
    %211 = vmatprep.subr.mxu0 0.0
    %212 = vmatpush1.msra.mxu0 %v133
    %213 = vmatprep.subr.mxu0 0.0
    %214 = vmatpush1.msra.mxu0 %v132
    %215 = vmatprep.subr.mxu0 0.0
    %216 = vmatpush1.msra.mxu0 %v131
    %217 = vmatprep.subr.mxu0 0.0
    %218 = vmatpush1.msra.mxu0 %v130
    %219 = vmatprep.subr.mxu0 0.0
    %220 = vmatpush1.msra.mxu0 %v129
    %221 = vmatprep.subr.mxu0 0.0
    %222 = vmatpush1.msra.mxu0 %v128
    %223 = vmatprep.subr.mxu0 0.0
    %224 = vmatpush1.msra.mxu0 %v127
    %225 = vmatprep.subr.mxu0 0.0
    %226 = vmatpush1.msra.mxu0 %v126
    %227 = vmatprep.subr.mxu0 0.0
    %228 = vmatpush1.msra.mxu0 %v125
    %229 = vmatprep.subr.mxu0 0.0
    %230 = vmatpush1.msra.mxu0 %v124
    %231 = vmatprep.subr.mxu0 0.0
    %232 = vmatpush1.msra.mxu0 %v123
    %233 = vmatprep.subr.mxu0 0.0
    %234 = vmatpush1.msra.mxu0 %v122
    %235 = vmatprep.subr.mxu0 0.0
    %236 = vmatpush1.msra.mxu0 %v121
    %237 = vmatprep.subr.mxu0 0.0
    %238 = vmatpush2.msra.mxu0 %v152
    %239 = vmatprep.subr.mxu0 0.0
    %240 = vmatpush2.msra.mxu0 %v151
    %241 = vmatprep.subr.mxu0 0.0
    %242 = vmatpush2.msra.mxu0 %v150
    %243 = vmatprep.subr.mxu0 0.0
    %244 = vmatpush2.msra.mxu0 %v149
    %245 = vmatprep.subr.mxu0 0.0
    %246 = vmatpush2.msra.mxu0 %v148
    %247 = vmatprep.subr.mxu0 0.0
    %248 = vmatpush2.msra.mxu0 %v147
    %249 = vmatprep.subr.mxu0 0.0
    %250 = vmatpush2.msra.mxu0 %v146
    %251 = vmatprep.subr.mxu0 0.0
    %252 = vmatpush2.msra.mxu0 %v145
    %253 = vmatprep.subr.mxu0 0.0
    %254 = vmatpush2.msra.mxu0 %v144
    %255 = vmatprep.subr.mxu0 0.0
    %256 = vmatpush2.msra.mxu0 %v143
    %257 = vmatprep.subr.mxu0 0.0
    %258 = vmatpush2.msra.mxu0 %v142
    %259 = vmatprep.subr.mxu0 0.0
    %260 = vmatpush2.msra.mxu0 %v141
    %261 = vmatprep.subr.mxu0 0.0
    %262 = vmatpush2.msra.mxu0 %v140
    %263 = vmatprep.subr.mxu0 0.0
    %264 = vmatpush2.msra.mxu0 %v139
    %265 = vmatprep.subr.mxu0 0.0
    %266 = vmatpush2.msra.mxu0 %v138
    %267 = vmatprep.subr.mxu0 0.0
    %268 = vmatpush2.msra.mxu0 %v137
    %269 = vmatprep.mubr.f32.mxu0 %v114
    %270 = vmatmul.mubr.f32.gmra.mxu0 %v113
    %v271 = vpop.f32.mrf.mxu0
    %v272 = vadd.f32 %v204, %v271
    %v273 = vpop.f32.mrf.mxu0
    %274 = vmatprep.mubr.f32.mxu0 %v118
    %275 = vmatmul.mubr.f32.gmra.mxu0 %v117
    %v276 = vpop.f32.mrf.mxu0
    %v277 = vadd.f32 %v204, %v276
    %v278 = vpop.f32.mrf.mxu0
    %279 = vdwg.mxu0
    %280 = vmatprep.subr.mxu0 0.0
    %281 = vmatpush1.msra.mxu0 %v168
    %282 = vmatprep.subr.mxu0 0.0
    %283 = vmatpush1.msra.mxu0 %v167
    %284 = vmatprep.subr.mxu0 0.0
    %285 = vmatpush1.msra.mxu0 %v166
    %286 = vmatprep.subr.mxu0 0.0
    %287 = vmatpush1.msra.mxu0 %v165
    %288 = vmatprep.subr.mxu0 0.0
    %289 = vmatpush1.msra.mxu0 %v164
    %290 = vmatprep.subr.mxu0 0.0
    %291 = vmatpush1.msra.mxu0 %v163
    %292 = vmatprep.subr.mxu0 0.0
    %293 = vmatpush1.msra.mxu0 %v162
    %294 = vmatprep.subr.mxu0 0.0
    %295 = vmatpush1.msra.mxu0 %v161
    %296 = vmatprep.subr.mxu0 0.0
    %297 = vmatpush1.msra.mxu0 %v160
    %298 = vmatprep.subr.mxu0 0.0
    %299 = vmatpush1.msra.mxu0 %v159
    %300 = vmatprep.subr.mxu0 0.0
    %301 = vmatpush1.msra.mxu0 %v158
    %302 = vmatprep.subr.mxu0 0.0
    %303 = vmatpush1.msra.mxu0 %v157
    %304 = vmatprep.subr.mxu0 0.0
    %305 = vmatpush1.msra.mxu0 %v156
    %306 = vmatprep.subr.mxu0 0.0
    %307 = vmatpush1.msra.mxu0 %v155
    %308 = vmatprep.subr.mxu0 0.0
    %309 = vmatpush1.msra.mxu0 %v154
    %310 = vmatprep.subr.mxu0 0.0
    %311 = vmatpush1.msra.mxu0 %v153
    %312 = vmatprep.subr.mxu0 0.0
    %313 = vmatpush2.msra.mxu0 %v184
    %314 = vmatprep.subr.mxu0 0.0
    %315 = vmatpush2.msra.mxu0 %v183
    %316 = vmatprep.subr.mxu0 0.0
    %317 = vmatpush2.msra.mxu0 %v182
    %318 = vmatprep.subr.mxu0 0.0
    %319 = vmatpush2.msra.mxu0 %v181
    %320 = vmatprep.subr.mxu0 0.0
    %321 = vmatpush2.msra.mxu0 %v180
    %322 = vmatprep.subr.mxu0 0.0
    %323 = vmatpush2.msra.mxu0 %v179
    %324 = vmatprep.subr.mxu0 0.0
    %325 = vmatpush2.msra.mxu0 %v178
    %326 = vmatprep.subr.mxu0 0.0
    %327 = vmatpush2.msra.mxu0 %v177
    %328 = vmatprep.subr.mxu0 0.0
    %329 = vmatpush2.msra.mxu0 %v176
    %330 = vmatprep.subr.mxu0 0.0
    %331 = vmatpush2.msra.mxu0 %v175
    %332 = vmatprep.subr.mxu0 0.0
    %333 = vmatpush2.msra.mxu0 %v174
    %334 = vmatprep.subr.mxu0 0.0
    %335 = vmatpush2.msra.mxu0 %v173
    %336 = vmatprep.subr.mxu0 0.0
    %337 = vmatpush2.msra.mxu0 %v172
    %338 = vmatprep.subr.mxu0 0.0
    %339 = vmatpush2.msra.mxu0 %v171
    %340 = vmatprep.subr.mxu0 0.0
    %341 = vmatpush2.msra.mxu0 %v170
    %342 = vmatprep.subr.mxu0 0.0
    %343 = vmatpush2.msra.mxu0 %v169
    %344 = vmatprep.mubr.f32.mxu0 %v116
    %345 = vmatmul.mubr.f32.gmra.mxu0 %v115
    %v346 = vpop.f32.mrf.mxu0
    %v347 = vadd.f32 %v272, %v346
    %v348 = vpop.f32.mrf.mxu0
    %349 = vmatprep.mubr.f32.mxu0 %v120
    %350 = vmatmul.mubr.f32.gmra.mxu0 %v119
    %v351 = vpop.f32.mrf.mxu0
    %v352 = vadd.f32 %v277, %v351
    %v353 = vpop.f32.mrf.mxu0
    %354 = vdwg.mxu0
    %v355 = vmax.f32 %v347, 0.0
    %v356 = vmax.f32 %v352, 0.0
    %v357 = vlaneseq
    %v358 = vshrl.u32 %v357, 7
    %v359 = vsub.s32 1, %v358
    %v360 = vrot.slane %v112, %v359
    %361 = vmatprep.subr.mxu0 0.0
    %362 = vmatpush1.msra.mxu0 %v200
    %363 = vmatprep.subr.mxu0 0.0
    %364 = vmatpush1.msra.mxu0 %v199
    %365 = vmatprep.subr.mxu0 0.0
    %366 = vmatpush1.msra.mxu0 %v198
    %367 = vmatprep.subr.mxu0 0.0
    %368 = vmatpush1.msra.mxu0 %v197
    %369 = vmatprep.subr.mxu0 0.0
    %370 = vmatpush1.msra.mxu0 %v196
    %371 = vmatprep.subr.mxu0 0.0
    %372 = vmatpush1.msra.mxu0 %v195
    %373 = vmatprep.subr.mxu0 0.0
    %374 = vmatpush1.msra.mxu0 %v194
    %375 = vmatprep.subr.mxu0 0.0
    %376 = vmatpush1.msra.mxu0 %v193
    %377 = vmatprep.subr.mxu0 0.0
    %378 = vmatpush1.msra.mxu0 %v192
    %379 = vmatprep.subr.mxu0 0.0
    %380 = vmatpush1.msra.mxu0 %v191
    %381 = vmatprep.subr.mxu0 0.0
    %382 = vmatpush1.msra.mxu0 %v190
    %383 = vmatprep.subr.mxu0 0.0
    %384 = vmatpush1.msra.mxu0 %v189
    %385 = vmatprep.subr.mxu0 0.0
    %386 = vmatpush1.msra.mxu0 %v188
    %387 = vmatprep.subr.mxu0 0.0
    %388 = vmatpush1.msra.mxu0 %v187
    %389 = vmatprep.subr.mxu0 0.0
    %390 = vmatpush1.msra.mxu0 %v186
    %391 = vmatprep.subr.mxu0 0.0
    %392 = vmatpush1.msra.mxu0 %v185
    %393 = vmatprep.subr.mxu0 0.0
    %394 = vmatpush2.msra.mxu0 0.0
    %395 = vmatprep.subr.mxu0 0.0
    %396 = vmatpush2.msra.mxu0 0.0
    %397 = vmatprep.subr.mxu0 0.0
    %398 = vmatpush2.msra.mxu0 0.0
    %399 = vmatprep.subr.mxu0 0.0
    %400 = vmatpush2.msra.mxu0 0.0
    %401 = vmatprep.subr.mxu0 0.0
    %402 = vmatpush2.msra.mxu0 0.0
    %403 = vmatprep.subr.mxu0 0.0
    %404 = vmatpush2.msra.mxu0 0.0
    %405 = vmatprep.subr.mxu0 0.0
    %406 = vmatpush2.msra.mxu0 0.0
    %407 = vmatprep.subr.mxu0 0.0
    %408 = vmatpush2.msra.mxu0 0.0
    %409 = vmatprep.subr.mxu0 0.0
    %410 = vmatpush2.msra.mxu0 0.0
    %411 = vmatprep.subr.mxu0 0.0
    %412 = vmatpush2.msra.mxu0 0.0
    %413 = vmatprep.subr.mxu0 0.0
    %414 = vmatpush2.msra.mxu0 0.0
    %415 = vmatprep.subr.mxu0 0.0
    %416 = vmatpush2.msra.mxu0 0.0
    %417 = vmatprep.subr.mxu0 0.0
    %418 = vmatpush2.msra.mxu0 0.0
    %419 = vmatprep.subr.mxu0 0.0
    %420 = vmatpush2.msra.mxu0 0.0
    %421 = vmatprep.subr.mxu0 0.0
    %422 = vmatpush2.msra.mxu0 0.0
    %423 = vmatprep.subr.mxu0 0.0
    %424 = vmatpush2.msra.mxu0 0.0
    %425 = vmatprep.mubr.f32.mxu0 0.0
    %426 = vmatmul.mubr.f32.gmra.mxu0 %v355
    %v427 = vpop.f32.mrf.mxu0
    %v428 = vadd.f32 %v360, %v427
    %v429 = vpop.f32.mrf.mxu0
    %430 = vmatprep.mubr.f32.mxu0 0.0
    %431 = vmatmul.mubr.f32.gmra.mxu0 %v356
    %v432 = vpop.f32.mrf.mxu0
    %v433 = vadd.f32 %v360, %v432
    %v434 = vpop.f32.mrf.mxu0
    %435 = vdwg.mxu0
    %v436 = vadd.f32 %v428, %v347
    %v437 = vadd.f32 %v433, %v352
    %438 = vadd.xlane.f32.xlu0 %v436
    %v439 = vpop.xlane.xlu0 %438
    %440 = vadd.xlane.f32.xlu0 %v437
    %v441 = vpop.xlane.xlu0 %440
    %v442 = vrcp.pop 128.0
    %v443 = vmul.f32 %v439, %v442
    %v444 = vmul.f32 %v441, %v442
    %v445 = vsub.f32 %v436, %v443
    %v446 = vsub.f32 %v437, %v444
    %v447 = vmul.f32 %v445, %v445
    %v448 = vmul.f32 %v446, %v446
    %449 = vadd.xlane.f32.xlu0 %v447
    %v450 = vpop.xlane.xlu0 %449
    %451 = vadd.xlane.f32.xlu0 %v448
    %v452 = vpop.xlane.xlu0 %451
    %v453 = vmul.f32 %v450, %v442
    %v454 = vmul.f32 %v452, %v442
    %v455 = vadd.f32 %v453, 1e-05
    %v456 = vadd.f32 %v454, 1e-05
    %v457 = vrsqrt.pop %v455
    %v458 = vrsqrt.pop %v456
    %v459 = vmul.f32 %v445, %v457
    %v460 = vmul.f32 %v446, %v458
    %v461 = vlaneseq
    %v462 = vshrl.u32 %v461, 7
    %v463 = vsub.s32 2, %v462
    %v464 = vrot.slane %v112, %v463
    %v465 = vmul.f32 %v459, %v464
    %v466 = vmul.f32 %v460, %v464
    %v467 = vlaneseq
    %v468 = vshrl.u32 %v467, 7
    %v469 = vsub.s32 3, %v468
    %v470 = vrot.slane %v112, %v469
    %v471 = vadd.f32 %v465, %v470
    %v472 = vadd.f32 %v466, %v470
    %473 = vst [vmem:[#allocation13] sm:$0xff] %v471
    %474 = vst [vmem:[#allocation13 + $0x8] sm:$0xff] %v472
    %v475 = vld [vmem:[#allocation5] sm:$0xff]
    %v476 = vld [vmem:[#allocation5 + $0x8] sm:$0xff]
    %v477 = vld [vmem:[#allocation5 + $0x10] sm:$0xff]
    %v478 = vld [vmem:[#allocation5 + $0x18] sm:$0xff]
    %v479 = vld [vmem:[#allocation10] sm:$0xff]
    %v480 = vld [vmem:[#allocation10 + $0x8] sm:$0xff]
    %v481 = vld [vmem:[#allocation10 + $0x10] sm:$0xff]
    %v482 = vld [vmem:[#allocation10 + $0x18] sm:$0xff]
    %v483 = vld [vmem:[#allocation10 + $0x20] sm:$0xff]
    %v484 = vld [vmem:[#allocation10 + $0x28] sm:$0xff]
    %v485 = vld [vmem:[#allocation10 + $0x30] sm:$0xff]
    %v486 = vld [vmem:[#allocation10 + $0x38] sm:$0xff]
    %v487 = vld [vmem:[#allocation10 + $0x40] sm:$0xff]
    %v488 = vld [vmem:[#allocation10 + $0x48] sm:$0xff]
    %v489 = vld [vmem:[#allocation10 + $0x50] sm:$0xff]
    %v490 = vld [vmem:[#allocation10 + $0x58] sm:$0xff]
    %v491 = vld [vmem:[#allocation10 + $0x60] sm:$0xff]
    %v492 = vld [vmem:[#allocation10 + $0x68] sm:$0xff]
    %v493 = vld [vmem:[#allocation10 + $0x70] sm:$0xff]
    %v494 = vld [vmem:[#allocation10 + $0x78] sm:$0xff]
    %v495 = vld [vmem:[#allocation10 + $0x80] sm:$0xff]
    %v496 = vld [vmem:[#allocation10 + $0x88] sm:$0xff]
    %v497 = vld [vmem:[#allocation10 + $0x90] sm:$0xff]
    %v498 = vld [vmem:[#allocation10 + $0x98] sm:$0xff]
    %v499 = vld [vmem:[#allocation10 + $0xa0] sm:$0xff]
    %v500 = vld [vmem:[#allocation10 + $0xa8] sm:$0xff]
    %v501 = vld [vmem:[#allocation10 + $0xb0] sm:$0xff]
    %v502 = vld [vmem:[#allocation10 + $0xb8] sm:$0xff]
    %v503 = vld [vmem:[#allocation10 + $0xc0] sm:$0xff]
    %v504 = vld [vmem:[#allocation10 + $0xc8] sm:$0xff]
    %v505 = vld [vmem:[#allocation10 + $0xd0] sm:$0xff]
    %v506 = vld [vmem:[#allocation10 + $0xd8] sm:$0xff]
    %v507 = vld [vmem:[#allocation10 + $0xe0] sm:$0xff]
    %v508 = vld [vmem:[#allocation10 + $0xe8] sm:$0xff]
    %v509 = vld [vmem:[#allocation10 + $0xf0] sm:$0xff]
    %v510 = vld [vmem:[#allocation10 + $0xf8] sm:$0xff]
    %v511 = vld [vmem:[#allocation11] sm:$0xff]
    %v512 = vld [vmem:[#allocation11 + $0x8] sm:$0xff]
    %v513 = vld [vmem:[#allocation11 + $0x10] sm:$0xff]
    %v514 = vld [vmem:[#allocation11 + $0x18] sm:$0xff]
    %v515 = vld [vmem:[#allocation11 + $0x20] sm:$0xff]
    %v516 = vld [vmem:[#allocation11 + $0x28] sm:$0xff]
    %v517 = vld [vmem:[#allocation11 + $0x30] sm:$0xff]
    %v518 = vld [vmem:[#allocation11 + $0x38] sm:$0xff]
    %v519 = vld [vmem:[#allocation11 + $0x40] sm:$0xff]
    %v520 = vld [vmem:[#allocation11 + $0x48] sm:$0xff]
    %v521 = vld [vmem:[#allocation11 + $0x50] sm:$0xff]
    %v522 = vld [vmem:[#allocation11 + $0x58] sm:$0xff]
    %v523 = vld [vmem:[#allocation11 + $0x60] sm:$0xff]
    %v524 = vld [vmem:[#allocation11 + $0x68] sm:$0xff]
    %v525 = vld [vmem:[#allocation11 + $0x70] sm:$0xff]
    %v526 = vld [vmem:[#allocation11 + $0x78] sm:$0xff]
    %v527 = vlaneseq
    %v528 = vshrl.u32 %v527, 7
    %v529 = vsub.s32 4, %v528
    %v530 = vrot.slane %v112, %v529
    %531 = vmatprep.subr.mxu0 0.0
    %532 = vmatpush1.msra.mxu0 %v494
    %533 = vmatprep.subr.mxu0 0.0
    %534 = vmatpush1.msra.mxu0 %v493
    %535 = vmatprep.subr.mxu0 0.0
    %536 = vmatpush1.msra.mxu0 %v492
    %537 = vmatprep.subr.mxu0 0.0
    %538 = vmatpush1.msra.mxu0 %v491
    %539 = vmatprep.subr.mxu0 0.0
    %540 = vmatpush1.msra.mxu0 %v490
    %541 = vmatprep.subr.mxu0 0.0
    %542 = vmatpush1.msra.mxu0 %v489
    %543 = vmatprep.subr.mxu0 0.0
    %544 = vmatpush1.msra.mxu0 %v488
    %545 = vmatprep.subr.mxu0 0.0
    %546 = vmatpush1.msra.mxu0 %v487
    %547 = vmatprep.subr.mxu0 0.0
    %548 = vmatpush1.msra.mxu0 %v486
    %549 = vmatprep.subr.mxu0 0.0
    %550 = vmatpush1.msra.mxu0 %v485
    %551 = vmatprep.subr.mxu0 0.0
    %552 = vmatpush1.msra.mxu0 %v484
    %553 = vmatprep.subr.mxu0 0.0
    %554 = vmatpush1.msra.mxu0 %v483
    %555 = vmatprep.subr.mxu0 0.0
    %556 = vmatpush1.msra.mxu0 %v482
    %557 = vmatprep.subr.mxu0 0.0
    %558 = vmatpush1.msra.mxu0 %v481
    %559 = vmatprep.subr.mxu0 0.0
    %560 = vmatpush1.msra.mxu0 %v480
    %561 = vmatprep.subr.mxu0 0.0
    %562 = vmatpush1.msra.mxu0 %v479
    %563 = vmatprep.subr.mxu0 0.0
    %564 = vmatpush2.msra.mxu0 %v510
    %565 = vmatprep.subr.mxu0 0.0
    %566 = vmatpush2.msra.mxu0 %v509
    %567 = vmatprep.subr.mxu0 0.0
    %568 = vmatpush2.msra.mxu0 %v508
    %569 = vmatprep.subr.mxu0 0.0
    %570 = vmatpush2.msra.mxu0 %v507
    %571 = vmatprep.subr.mxu0 0.0
    %572 = vmatpush2.msra.mxu0 %v506
    %573 = vmatprep.subr.mxu0 0.0
    %574 = vmatpush2.msra.mxu0 %v505
    %575 = vmatprep.subr.mxu0 0.0
    %576 = vmatpush2.msra.mxu0 %v504
    %577 = vmatprep.subr.mxu0 0.0
    %578 = vmatpush2.msra.mxu0 %v503
    %579 = vmatprep.subr.mxu0 0.0
    %580 = vmatpush2.msra.mxu0 %v502
    %581 = vmatprep.subr.mxu0 0.0
    %582 = vmatpush2.msra.mxu0 %v501
    %583 = vmatprep.subr.mxu0 0.0
    %584 = vmatpush2.msra.mxu0 %v500
    %585 = vmatprep.subr.mxu0 0.0
    %586 = vmatpush2.msra.mxu0 %v499
    %587 = vmatprep.subr.mxu0 0.0
    %588 = vmatpush2.msra.mxu0 %v498
    %589 = vmatprep.subr.mxu0 0.0
    %590 = vmatpush2.msra.mxu0 %v497
    %591 = vmatprep.subr.mxu0 0.0
    %592 = vmatpush2.msra.mxu0 %v496
    %593 = vmatprep.subr.mxu0 0.0
    %594 = vmatpush2.msra.mxu0 %v495
    %595 = vmatprep.mubr.f32.mxu0 %v476
    %596 = vmatmul.mubr.f32.gmra.mxu0 %v475
    %v597 = vpop.f32.mrf.mxu0
    %v598 = vadd.f32 %v530, %v597
    %v599 = vpop.f32.mrf.mxu0
    %600 = vmatprep.mubr.f32.mxu0 %v478
    %601 = vmatmul.mubr.f32.gmra.mxu0 %v477
    %v602 = vpop.f32.mrf.mxu0
    %v603 = vadd.f32 %v530, %v602
    %v604 = vpop.f32.mrf.mxu0
    %605 = vdwg.mxu0
    %v606 = vmax.f32 %v598, 0.0
    %v607 = vmax.f32 %v603, 0.0
    %v608 = vlaneseq
    %v609 = vshrl.u32 %v608, 7
    %v610 = vsub.s32 5, %v609
    %v611 = vrot.slane %v112, %v610
    %612 = vmatprep.subr.mxu0 0.0
    %613 = vmatpush1.msra.mxu0 %v526
    %614 = vmatprep.subr.mxu0 0.0
    %615 = vmatpush1.msra.mxu0 %v525
    %616 = vmatprep.subr.mxu0 0.0
    %617 = vmatpush1.msra.mxu0 %v524
    %618 = vmatprep.subr.mxu0 0.0
    %619 = vmatpush1.msra.mxu0 %v523
    %620 = vmatprep.subr.mxu0 0.0
    %621 = vmatpush1.msra.mxu0 %v522
    %622 = vmatprep.subr.mxu0 0.0
    %623 = vmatpush1.msra.mxu0 %v521
    %624 = vmatprep.subr.mxu0 0.0
    %625 = vmatpush1.msra.mxu0 %v520
    %626 = vmatprep.subr.mxu0 0.0
    %627 = vmatpush1.msra.mxu0 %v519
    %628 = vmatprep.subr.mxu0 0.0
    %629 = vmatpush1.msra.mxu0 %v518
    %630 = vmatprep.subr.mxu0 0.0
    %631 = vmatpush1.msra.mxu0 %v517
    %632 = vmatprep.subr.mxu0 0.0
    %633 = vmatpush1.msra.mxu0 %v516
    %634 = vmatprep.subr.mxu0 0.0
    %635 = vmatpush1.msra.mxu0 %v515
    %636 = vmatprep.subr.mxu0 0.0
    %637 = vmatpush1.msra.mxu0 %v514
    %638 = vmatprep.subr.mxu0 0.0
    %639 = vmatpush1.msra.mxu0 %v513
    %640 = vmatprep.subr.mxu0 0.0
    %641 = vmatpush1.msra.mxu0 %v512
    %642 = vmatprep.subr.mxu0 0.0
    %643 = vmatpush1.msra.mxu0 %v511
    %644 = vmatprep.subr.mxu0 0.0
    %645 = vmatpush2.msra.mxu0 0.0
    %646 = vmatprep.subr.mxu0 0.0
    %647 = vmatpush2.msra.mxu0 0.0
    %648 = vmatprep.subr.mxu0 0.0
    %649 = vmatpush2.msra.mxu0 0.0
    %650 = vmatprep.subr.mxu0 0.0
    %651 = vmatpush2.msra.mxu0 0.0
    %652 = vmatprep.subr.mxu0 0.0
    %653 = vmatpush2.msra.mxu0 0.0
    %654 = vmatprep.subr.mxu0 0.0
    %655 = vmatpush2.msra.mxu0 0.0
    %656 = vmatprep.subr.mxu0 0.0
    %657 = vmatpush2.msra.mxu0 0.0
    %658 = vmatprep.subr.mxu0 0.0
    %659 = vmatpush2.msra.mxu0 0.0
    %660 = vmatprep.subr.mxu0 0.0
    %661 = vmatpush2.msra.mxu0 0.0
    %662 = vmatprep.subr.mxu0 0.0
    %663 = vmatpush2.msra.mxu0 0.0
    %664 = vmatprep.subr.mxu0 0.0
    %665 = vmatpush2.msra.mxu0 0.0
    %666 = vmatprep.subr.mxu0 0.0
    %667 = vmatpush2.msra.mxu0 0.0
    %668 = vmatprep.subr.mxu0 0.0
    %669 = vmatpush2.msra.mxu0 0.0
    %670 = vmatprep.subr.mxu0 0.0
    %671 = vmatpush2.msra.mxu0 0.0
    %672 = vmatprep.subr.mxu0 0.0
    %673 = vmatpush2.msra.mxu0 0.0
    %674 = vmatprep.subr.mxu0 0.0
    %675 = vmatpush2.msra.mxu0 0.0
    %676 = vmatprep.mubr.f32.mxu0 0.0
    %677 = vmatmul.mubr.f32.gmra.mxu0 %v606
    %v678 = vpop.f32.mrf.mxu0
    %v679 = vadd.f32 %v611, %v678
    %v680 = vpop.f32.mrf.mxu0
    %681 = vmatprep.mubr.f32.mxu0 0.0
    %682 = vmatmul.mubr.f32.gmra.mxu0 %v607
    %v683 = vpop.f32.mrf.mxu0
    %v684 = vadd.f32 %v611, %v683
    %v685 = vpop.f32.mrf.mxu0
    %686 = vdwg.mxu0
    %v687 = vadd.f32 %v679, %v598
    %v688 = vadd.f32 %v684, %v603
    %689 = vadd.xlane.f32.xlu0 %v687
    %v690 = vpop.xlane.xlu0 %689
    %691 = vadd.xlane.f32.xlu0 %v688
    %v692 = vpop.xlane.xlu0 %691
    %v693 = vmul.f32 %v690, %v442
    %v694 = vmul.f32 %v692, %v442
    %v695 = vsub.f32 %v687, %v693
    %v696 = vsub.f32 %v688, %v694
    %v697 = vmul.f32 %v695, %v695
    %v698 = vmul.f32 %v696, %v696
    %699 = vadd.xlane.f32.xlu0 %v697
    %v700 = vpop.xlane.xlu0 %699
    %701 = vadd.xlane.f32.xlu0 %v698
    %v702 = vpop.xlane.xlu0 %701
    %v703 = vmul.f32 %v700, %v442
    %v704 = vmul.f32 %v702, %v442
    %v705 = vadd.f32 %v703, 1e-05
    %v706 = vadd.f32 %v704, 1e-05
    %v707 = vrsqrt.pop %v705
    %v708 = vrsqrt.pop %v706
    %v709 = vmul.f32 %v695, %v707
    %v710 = vmul.f32 %v696, %v708
    %v711 = vlaneseq
    %v712 = vshrl.u32 %v711, 7
    %v713 = vsub.s32 6, %v712
    %v714 = vrot.slane %v112, %v713
    %v715 = vmul.f32 %v709, %v714
    %v716 = vmul.f32 %v710, %v714
    %v717 = vlaneseq
    %v718 = vshrl.u32 %v717, 7
    %v719 = vsub.s32 7, %v718
    %v720 = vrot.slane %v112, %v719
    %v721 = vadd.f32 %v715, %v720
    %v722 = vadd.f32 %v716, %v720
    %723 = vst [vmem:[#allocation14] sm:$0xff] %v721
    %724 = vst [vmem:[#allocation14 + $0x8] sm:$0xff] %v722
    // Predicated region
    $region54: #{tpu_custom_call.1} parent=1 // pred_check
      _
    $region55: #{tpu_custom_call.1} parent=1 // pred_check_branch
      %726 = sbr.rel (0) target = $region57
    $region56: #{tpu_custom_call.1} parent=1 // pred_region
      %s728 = ssub.s32 256, 128
      %729 = vsyncadd [#allocation4], %s728
      %s730 = sshll.u32 [#allocation13], 4
      %s731 = int_to_ptr.vmem [resolvable:$true] %s730
      %736 = dma.vmem_to_hbm [thread:$0]  %s731, 128, %s7, [#allocation4], 128, 128, 8
    $region57: #{tpu_custom_call.1} parent=1 // pred_fallthru
      _
    // Predicated region
    $region58: #{tpu_custom_call.1} parent=1 // pred_check
      _
    $region59: #{tpu_custom_call.1} parent=1 // pred_check_branch
      %738 = sbr.rel (0) target = $region61
    $region60: #{tpu_custom_call.1} parent=1 // pred_region
      %s740 = ssub.s32 256, 128
      %741 = vsyncadd [#allocation15], %s740
      %s742 = sshll.u32 [#allocation14], 4
      %s743 = int_to_ptr.vmem [resolvable:$true] %s742
      %748 = dma.vmem_to_hbm [thread:$0]  %s743, 128, %s8, [#allocation15], 128, 128, 8
    $region61: #{tpu_custom_call.1} parent=1 // pred_fallthru
      _
    // Predicated region
    $region62: #{tpu_custom_call.1} parent=1 // pred_check
      _
    $region63: #{tpu_custom_call.1} parent=1 // pred_check_branch
      %750 = sbr.rel (0) target = $region65
    $region64: #{tpu_custom_call.1} parent=1 // pred_region
      %751 = dma.done [#allocation4], 256
    $region65: #{tpu_custom_call.1} parent=1 // pred_fallthru
      _
    // Predicated region
    $region66: #{tpu_custom_call.1} parent=1 // pred_check
      _
    $region67: #{tpu_custom_call.1} parent=1 // pred_check_branch
      %753 = sbr.rel (0) target = $region69
    $region68: #{tpu_custom_call.1} parent=1 // pred_region
      %754 = dma.done [#allocation15], 256
    $region69: #{tpu_custom_call.1} parent=1 // pred_fallthru
      _
    %755 = vsyncpa [#allocation3], 1
    %756 = vsyncpa [#allocation6], 1
    %757 = vsyncpa [#allocation9], 1
    %758 = vsyncpa [#allocation12], 1
    %759 = vsyncpa [#allocation4], 1
    %760 = vsyncpa [#allocation15], 1

</llo_original>
